<compile_context>
chip_gen: v7x
topology: tpu7x:2x2x1
jax: 0.10.0
libtpu: 0.0.40
codegen_flags: <defaults>
</compile_context>

<pallas_src>
import functools

import jax
import jax.numpy as jnp
from jax.experimental import pallas as pl
from jax.experimental.pallas import tpu as pltpu


_TARGET_TILE_BYTES = 4 * 1024 * 1024   # ~4 MiB per block (in+out double-buffered ≈ 16 MiB VMEM)
_MIN_PALLAS_BYTES = 1 * 1024 * 1024    # below this, plain JAX broadcast-multiply is faster


def _drop_path_kernel(x_ref, s_ref, o_ref):
    # x_ref/o_ref: (tile_r, LANE) VMEM tile of the flattened batch.
    # s_ref:       (tile_r, 1) per-row scale (mask/keep_prob), broadcast over lanes.
    o_ref[...] = x_ref[...] * s_ref[...]


def _pick_lane(p: int):
    for lane in (1024, 512, 256, 128):
        if p % lane == 0:
            return lane
    return None


@functools.partial(
    jax.jit,
    static_argnames=("drop_prob", "training", "force_pallas", "target_tile_bytes"),
)
def drop_path(x, key, drop_prob: float = 0.0, training: bool = False, *,
              force_pallas: bool = False, target_tile_bytes: int = _TARGET_TILE_BYTES):
    """Pallas DropPath forward. x: (B, ...) — any trailing layout works."""
    if drop_prob == 0.0 or not training:
        return x

    keep_prob = 1.0 - drop_prob
    B = x.shape[0]
    P = 1
    for d in x.shape[1:]:
        P *= d

    # Per-sample binary mask, exactly floor(keep_prob + U[0,1)); fold in 1/keep_prob.
    u = jax.random.uniform(key, (B,), dtype=jnp.float32)
    scale = jnp.floor(keep_prob + u) / keep_prob            # (B,) f32, values in {0, 1/keep_prob}

    itemsize = jnp.dtype(x.dtype).itemsize
    lane = _pick_lane(P)
    total_bytes = B * P * itemsize

    if lane is None or (not force_pallas and total_bytes < _MIN_PALLAS_BYTES):
        # Tiny activations or a per-sample volume with no 128-divisor: the fused
        # XLA broadcast-multiply is already at HBM roofline with zero copies.
        bshape = (B,) + (1,) * (x.ndim - 1)
        return x * scale.astype(x.dtype).reshape(bshape)

    # ---- copy-free lane-dense layout: (B, ...) -> (B*rows, lane) ----
    rows = P // lane                 # rows per sample
    total_rows = B * rows

    sublane = 8 * max(1, 4 // itemsize)          # 8 for f32, 16 for bf16, 32 for int8/fp8
    tile_r = (target_tile_bytes // (lane * itemsize)) // sublane * sublane
    tile_r = max(sublane, tile_r)
    if tile_r >= total_rows:
        tile_r = total_rows          # full-extent block (legal even if not sublane-aligned)
    num_blocks = pl.cdiv(total_rows, tile_r)     # ragged edge blocks handled by Pallas

    x_r = x.reshape(total_rows, lane)            # contiguous reshape: no data movement
    # Tiny per-row scale tensor (total_rows * itemsize bytes); lets one block span samples.
    s_rows = jnp.repeat(scale.astype(x.dtype), rows)[:, None]   # (total_rows, 1)

    out = pl.pallas_call(
        _drop_path_kernel,
        out_shape=jax.ShapeDtypeStruct((total_rows, lane), x.dtype),
        grid=(num_blocks,),
        in_specs=[
            pl.BlockSpec((tile_r, lane), lambda r: (r, 0)),
            pl.BlockSpec((tile_r, 1), lambda r: (r, 0)),
        ],
        out_specs=pl.BlockSpec((tile_r, lane), lambda r: (r, 0)),
        compiler_params=pltpu.CompilerParams(
            dimension_semantics=("parallel",),
            vmem_limit_bytes=32 * 1024 * 1024,
        ),
    )(x_r, s_rows)

    return out.reshape(x.shape)


if __name__ == "__main__":
    key = jax.random.PRNGKey(0)
    kx, kmask, kx2 = jax.random.split(key, 3)

    drop_prob = 0.25
    keep_prob = 1.0 - drop_prob

    # --- Case 1: canonical small NCHW shape, single full-extent block ---
    B, C, H, W = 2, 4, 16, 16            # P = 1024 -> lane = 1024, rows/sample = 1
    x = jax.random.normal(kx, (B, C, H, W), dtype=jnp.float32)

    y_train = drop_path(x, kmask, drop_prob=drop_prob, training=True, force_pallas=True)
    y_train = jax.block_until_ready(y_train)

    u = jax.random.uniform(kmask, (B,), dtype=jnp.float32)
    mask = jnp.floor(keep_prob + u).reshape(B, 1, 1, 1)
    y_ref = x / keep_prob * mask
    assert jnp.allclose(y_train, y_ref, atol=1e-6, rtol=1e-6)

    # --- Case 2: multi-block grid with a ragged edge block (sample-packed axis) ---
    B2, C2, H2, W2 = 3, 5, 16, 8         # P = 640 -> lane = 128, rows/sample = 5, total_rows = 15
    x2 = jax.random.normal(kx2, (B2, C2, H2, W2), dtype=jnp.float32)
    y2 = drop_path(x2, kmask, drop_prob=drop_prob, training=True,
                   force_pallas=True, target_tile_bytes=4096)   # tile_r = 8 -> 2 blocks (edge = 7 rows)
    y2 = jax.block_until_ready(y2)

    u2 = jax.random.uniform(kmask, (B2,), dtype=jnp.float32)
    mask2 = jnp.floor(keep_prob + u2).reshape(B2, 1, 1, 1)
    y2_ref = x2 / keep_prob * mask2
    assert jnp.allclose(y2, y2_ref, atol=1e-6, rtol=1e-6)

    # --- Eval mode / drop_prob=0: identity ---
    y_eval = drop_path(x, kmask, drop_prob=drop_prob, training=False)
    y_eval = jax.block_until_ready(y_eval)
    assert jnp.array_equal(y_eval, x)

    print("KERNEL_OK")
</pallas_src>

<mosaic_0001>
module attributes {stable_mosaic.version = 11 : i64} {
  func.func @_drop_path_kernel(%arg0: i32, %arg1: memref<2x1024xf32, #tpu.memory_space<vmem>>, %arg2: memref<2x1xf32, #tpu.memory_space<vmem>>, %arg3: memref<2x1024xf32, #tpu.memory_space<vmem>>) attributes {dimension_semantics = [#tpu.dimension_semantics<parallel>], iteration_bounds = array<i64: 1>, scalar_prefetch = 0 : i64, scratch_operands = 0 : i64, tpu.core_type = #tpu.core_type<tc>, window_params = [{transform_indices = @transform_0, window_bounds = array<i64: 2, 1024>}, {transform_indices = @transform_1, window_bounds = array<i64: 2, 1>}, {transform_indices = @transform_2, window_bounds = array<i64: 2, 1024>}]} {
    %c0 = arith.constant 0 : index
    %c0_0 = arith.constant 0 : index
    %0 = vector.load %arg1[%c0, %c0_0] : memref<2x1024xf32, #tpu.memory_space<vmem>>, vector<2x1024xf32>
    %c0_1 = arith.constant 0 : index
    %c0_2 = arith.constant 0 : index
    %1 = vector.load %arg2[%c0_1, %c0_2] : memref<2x1xf32, #tpu.memory_space<vmem>>, vector<2x1xf32>
    %2 = vector.broadcast %1 : vector<2x1xf32> to vector<2x1024xf32>
    %3 = arith.mulf %0, %2 : vector<2x1024xf32>
    %c0_3 = arith.constant 0 : index
    %c0_4 = arith.constant 0 : index
    %4 = vector.load %arg3[%c0_3, %c0_4] : memref<2x1024xf32, #tpu.memory_space<vmem>>, vector<2x1024xf32>
    tpu.vector_store %arg3[%c0_3, %c0_4], %3 {strides = array<i32>} : memref<2x1024xf32, #tpu.memory_space<vmem>>, vector<2x1024xf32>,
    return
  }
  func.func @transform_0(%arg0: i32) -> (i32, i32) {
    %c0_i32 = arith.constant 0 : i32
    %c0_i32_0 = arith.constant 0 : i32
    return %arg0, %c0_i32 : i32, i32
  }
  func.func @transform_1(%arg0: i32) -> (i32, i32) {
    %c0_i32 = arith.constant 0 : i32
    %c0_i32_0 = arith.constant 0 : i32
    return %arg0, %c0_i32 : i32, i32
  }
  func.func @transform_2(%arg0: i32) -> (i32, i32) {
    %c0_i32 = arith.constant 0 : i32
    %c0_i32_0 = arith.constant 0 : i32
    return %arg0, %c0_i32 : i32, i32
  }
}

</mosaic_0001>

<llo_original>
// kernel: drop_path.1
$region0: #{drop_path.1}
  #allocation0 [shape = 'u32[]', space=smem, size = 0x4, offset = 0x4, fixed_abs, tag = 'smem constant byte address 0x4 - core index']
  #allocation1 [shape = 'u32[144,128]{1,0:T(1,128)}', space=vmem, size = 0x12000, scoped, tag = 'internal scratch']
  %s0 = inlined_call_operand.vmem [shape: f32[2,1024], index: 0, kind: input, shape index: {}]
  %s1 = inlined_call_operand.vmem [shape: f32[2,1], index: 1, kind: input, shape index: {}]
  %s2 = inlined_call_operand.vmem [shape: f32[2,1024], index: 2, kind: output, shape index: {}]
  %s3 = sld [smem:[#allocation0]]
  $region18: #{drop_path.1} parent=0
    _
  %s5 = ssub.s32 1, %s3
  %s6 = scalar_select 0, %s5, %s3
  // Predicated region
  $region2: #{drop_path.1} parent=0 // pred_check
    _
  $region3: #{drop_path.1} parent=0 // pred_check_branch
    %8 = sbr.rel (0) target = $region5
  $region4: #{drop_path.1} parent=0 // pred_region
    _
  $region5: #{drop_path.1} parent=0 // pred_fallthru
    _
  // Predicated region
  $region6: #{drop_path.1} parent=0 // pred_check
    _
  $region7: #{drop_path.1} parent=0 // pred_check_branch
    %10 = sbr.rel (0) target = $region9
  $region8: #{drop_path.1} parent=0 // pred_region
    _
  $region9: #{drop_path.1} parent=0 // pred_fallthru
    _
  %v11 = vld [vmem:[%s0] sm:$0xff]
  %v12 = vld [vmem:[%s0 + $0x8] sm:$0xff]
  %v13 = vld [vmem:[%s1] sm:$0x3]
  %15 = vset.pattern.permute.xlu0 0
  %16 = vperm.xlu0 %15, %v13
  %v17 = vpop.permute.xlu0 %16
  %v19 = vunpack.c.l.s4 269488144
  %v20 = vunpack.c.0.s8 %v19
  %v21 = vlaneseq
  %v22 = vshrl.u32 %v21, 7
  %v23 = vsub.s32 %v20, %v22
  %v24 = vrot.slane %v17, %v23
  %v26 = vmul.f32 %v11, %v24
  %v27 = vmul.f32 %v12, %v24
  %28 = vst [vmem:[%s2] sm:$0xff] %v26
  %29 = vst [vmem:[%s2 + $0x8] sm:$0xff] %v27
  // Predicated region
  $region10: #{drop_path.1} parent=0 // pred_check
    _
  $region11: #{drop_path.1} parent=0 // pred_check_branch
    %31 = sbr.rel (0) target = $region13
  $region12: #{drop_path.1} parent=0 // pred_region
    _
  $region13: #{drop_path.1} parent=0 // pred_fallthru
    _
  // Predicated region
  $region14: #{drop_path.1} parent=0 // pred_check
    _
  $region15: #{drop_path.1} parent=0 // pred_check_branch
    %33 = sbr.rel (0) target = $region17
  $region16: #{drop_path.1} parent=0 // pred_region
    _
  $region17: #{drop_path.1} parent=0 // pred_fallthru
    _

</llo_original>
